<compile_context>
chip_gen: v7x
topology: tpu7x:2x2x1
jax: 0.10.0
libtpu: 0.0.40
codegen_flags: <defaults>
</compile_context>

<pallas_src>
import jax
import jax.numpy as jnp
from jax import lax
from jax.experimental import pallas as pl
from jax.experimental.pallas import tpu as pltpu


def _loss_kernel(preds_ref, targets_ref, lengths_ref, out_ref,
                 m_scr, l_scr, p_scr):
    """One (split, batch-tile, time-tile, class-tile) grid step."""
    si = pl.program_id(0)          # time-range split (v7x dual-TC)
    ti = pl.program_id(2)          # time tile within the split
    ci = pl.program_id(3)          # class tile
    nt_half = pl.num_programs(2)
    nc = pl.num_programs(3)

    @pl.when((ti == 0) & (ci == 0))
    def _():
        out_ref[...] = jnp.zeros_like(out_ref)

    @pl.when(ci == 0)
    def _():
        m_scr[...] = jnp.full_like(m_scr, -jnp.inf)
        l_scr[...] = jnp.zeros_like(l_scr)
        p_scr[...] = jnp.zeros_like(p_scr)

    logits = preds_ref[...].astype(jnp.float32)          # (Tblk, Bblk, Cblk)
    Tblk, Bblk, Cblk = logits.shape
    tgt = targets_ref[...]                               # (Tblk, Bblk) int32

    # ---- online logsumexp over the class tiles ----
    m_blk = jnp.max(logits, axis=-1)                     # (Tblk, Bblk)
    m_old = m_scr[...]
    m_new = jnp.maximum(m_old, m_blk)
    sum_exp = jnp.sum(jnp.exp(logits - m_new[..., None]), axis=-1)
    l_scr[...] = l_scr[...] * jnp.exp(m_old - m_new) + sum_exp
    m_scr[...] = m_new

    # ---- picked raw logit of the target class (one-hot select on raw logits;
    #      no second big shifted temporary).  Out-of-range ids silently pick 0.
    # TODO(synk): on v7x this class-axis reduction could be offloaded to the
    # idle MXU via an f32 matmul with a ones vector if VALU becomes the limiter.
    class_ids = lax.broadcasted_iota(jnp.int32, (1, 1, Cblk), 2) + ci * Cblk
    onehot = class_ids == tgt[..., None]
    p_scr[...] = p_scr[...] + jnp.sum(jnp.where(onehot, logits, 0.0), axis=-1)

    @pl.when(ci == nc - 1)
    def _():
        lens = lengths_ref[...]                          # (1, Bblk) int32
        nll = (m_scr[...] + jnp.log(l_scr[...])) - p_scr[...]   # (Tblk, Bblk)
        # Valid-token mask on the GLOBAL time index (also neutralizes padded
        # rows of ragged last tiles and clamped duplicate blocks).
        tb = si * nt_half + ti
        t_ids = lax.broadcasted_iota(jnp.int32, (Tblk, Bblk), 0) + tb * Tblk
        masked = jnp.where(t_ids < lens, nll, 0.0)
        out_ref[...] = out_ref[...] + jnp.sum(masked, axis=0)[None, None, :]


def _chip_profile():
    """Return (per-block preds byte budget, vmem_limit cap, dual_tensorcore)."""
    try:
        kind = (jax.devices()[0].device_kind or "").lower().replace(" ", "")
    except Exception:
        kind = ""
    if "v7" in kind or "7x" in kind:
        # v7x: 64 MiB physical VMEM per TC, ~3.2 TB/s HBM, 2 TCs / chip.
        return 12 * 2**20, 44 * 2**20, True
    if "v6" in kind:
        # v6e: 128 MiB VMEM, ~1.4 TB/s HBM.
        return 12 * 2**20, 64 * 2**20, False
    if "v5" in kind:
        # v5e: 128 MiB VMEM, ~0.82 TB/s HBM.
        return 8 * 2**20, 48 * 2**20, False
    # Unknown chip / interpret mode: conservative.
    return 6 * 2**20, 40 * 2**20, False


def _lane_pad(c):
    return ((c + 127) // 128) * 128


def loss_forward(preds, targets, lengths, *, _block_budget=None, _force_split=False):
    """Pallas equivalent of the PyTorch `Loss.forward`.

    preds:   (T, B, C) float — kept in its native dtype for the HBM stream
             (bf16/fp16 callers get ~2x bandwidth; the f32 upcast is per-tile).
    targets: (T, B)    int
    lengths: (B,)      int   (valid prefix length per batch element)
    returns: scalar float32
    """
    T, B, C = preds.shape
    targets = targets.astype(jnp.int32)
    lengths = lengths.astype(jnp.int32)
    lengths2d = lengths.reshape(1, B)

    block_budget, vmem_cap, dual_tc = _chip_profile()
    if _block_budget is not None:
        block_budget = int(_block_budget)
    itemsize = jnp.dtype(preds.dtype).itemsize

    # ---- batch tiling (targets / lengths / out last dim must be a 128
    #      multiple or the full batch) ----
    Bblk = 128 if (B > 128 and B % 128 == 0) else B
    nb = B // Bblk

    # ---- class tiling: keep an 8-row time tile within the block budget ----
    Cblk = C
    if C % 128 == 0 and 8 * Bblk * _lane_pad(C) * itemsize > block_budget:
        max_cb = max(128, (block_budget // (8 * Bblk * itemsize)) // 128 * 128)
        start = min(int(max_cb), C)
        start = max(128, (start // 128) * 128)
        for cand in range(start, 127, -128):
            if C % cand == 0:
                Cblk = cand
                break
    # TODO(synk): C that is not a multiple of 128 (or has no 128-multiple
    # divisor) falls back to a full-C block; a pathological huge C could still
    # exceed VMEM — would need a masked ragged class tile.
    if C % Cblk != 0:
        Cblk = C
    nc = C // Cblk

    # ---- time tiling: fill the remaining per-block budget (lane-padded) ----
    bytes_per_row = max(1, Bblk * _lane_pad(Cblk) * itemsize)
    t_rows = max(1, block_budget // bytes_per_row)
    if t_rows >= T:
        Tblk = T
    else:
        Tblk = min(T, max(8, (t_rows // 8) * 8))     # multiple of 8 (targets)
    nt_total = pl.cdiv(T, Tblk)

    # ---- v7x dual-TC: split the time range when the batch can't shard ----
    nsplit = 2 if ((dual_tc or _force_split) and nb == 1 and nt_total >= 2) else 1
    nt_half = pl.cdiv(nt_total, nsplit)
    if nsplit * nt_half > nt_total:
        def t_block(si, ti):
            # clamp overhang; the kernel's time mask zeroes the duplicate block
            return jnp.minimum(si * nt_half + ti, nt_total - 1)
    else:
        def t_block(si, ti):
            return si * nt_half + ti

    # ---- explicit VMEM budget (double-buffered preds + targets + slack) ----
    preds_blk = Tblk * Bblk * _lane_pad(Cblk) * itemsize
    tgt_blk = ((Tblk + 7) // 8) * 8 * _lane_pad(Bblk) * 4
    scratch_b = 3 * ((Tblk + 7) // 8) * 8 * _lane_pad(Bblk) * 4
    small = 4 * _lane_pad(Bblk) * 4
    need = 2 * preds_blk + 2 * tgt_blk + scratch_b + small
    vmem_limit = int(min(vmem_cap, max(32 * 2**20, need + 8 * 2**20)))

    out = pl.pallas_call(
        _loss_kernel,
        out_shape=jax.ShapeDtypeStruct((nsplit, 1, B), jnp.float32),
        grid=(nsplit, nb, nt_half, nc),
        in_specs=[
            pl.BlockSpec((Tblk, Bblk, Cblk),
                         lambda si, bi, ti, ci: (t_block(si, ti), bi, ci)),
            pl.BlockSpec((Tblk, Bblk),
                         lambda si, bi, ti, ci: (t_block(si, ti), bi)),
            pl.BlockSpec((1, Bblk), lambda si, bi, ti, ci: (0, bi)),
        ],
        out_specs=pl.BlockSpec((1, 1, Bblk), lambda si, bi, ti, ci: (si, 0, bi)),
        scratch_shapes=[pltpu.VMEM((Tblk, Bblk), jnp.float32)] * 3,
        compiler_params=pltpu.CompilerParams(
            dimension_semantics=("parallel", "parallel", "arbitrary", "arbitrary"),
            vmem_limit_bytes=vmem_limit),
    )(preds, targets, lengths2d)

    # Tiny final glue: per-example mean over the valid prefix, then batch mean.
    # max(len, 1) guards zero-length examples (PyTorch would NaN there).
    per_example_sum = jnp.sum(out[:, 0, :], axis=0)          # (B,)
    denom = jnp.maximum(lengths, 1).astype(jnp.float32)
    return jnp.sum(per_example_sum / denom) / jnp.float32(B)


def ref_loss(preds, targets, lengths):
    """Pure-JAX reference matching the PyTorch module semantics."""
    T, B, C = preds.shape
    p = jnp.transpose(preds, (1, 0, 2))
    t = jnp.transpose(targets, (1, 0))
    loss = 0.0
    for b in range(B):
        L = int(lengths[b])
        logp = jax.nn.log_softmax(p[b, :L].astype(jnp.float32), axis=-1)
        nll = -logp[jnp.arange(L), t[b, :L]]
        loss = loss + jnp.mean(nll)
    return loss / B


if __name__ == "__main__":
    key = jax.random.PRNGKey(0)

    # --- test 1: module-scale shapes (seq=8, batch=2, classes=32) ---
    T, B, C = 8, 2, 32
    k1, k2, k3, k4 = jax.random.split(key, 4)
    preds = jax.random.normal(k1, (T, B, C), dtype=jnp.float32)
    targets = jax.random.randint(k2, (T, B), 0, C, dtype=jnp.int32)
    lengths = jnp.array([8, 5], dtype=jnp.int32)

    loss = loss_forward(preds, targets, lengths)
    jax.block_until_ready(loss)
    expected = ref_loss(preds, targets, lengths)
    assert jnp.allclose(loss, expected, rtol=1e-5, atol=1e-5), (loss, expected)

    # --- test 2: exercise the tiled paths (class tiles, ragged time tiles,
    #     dual-TC time split) with a tiny forced block budget ---
    T2, B2, C2 = 40, 8, 256
    preds2 = jax.random.normal(k3, (T2, B2, C2), dtype=jnp.float32)
    targets2 = jax.random.randint(k4, (T2, B2), 0, C2, dtype=jnp.int32)
    lengths2 = jnp.array([40, 1, 17, 33, 8, 40, 25, 3], dtype=jnp.int32)

    loss2 = loss_forward(preds2, targets2, lengths2,
                         _block_budget=32 * 1024, _force_split=True)
    jax.block_until_ready(loss2)
    expected2 = ref_loss(preds2, targets2, lengths2)
    assert jnp.allclose(loss2, expected2, rtol=1e-5, atol=1e-5), (loss2, expected2)

    print("KERNEL_OK")
</pallas_src>

<mosaic_0001>
module attributes {stable_mosaic.version = 11 : i64} {
  func.func @_loss_kernel(%arg0: i32, %arg1: i32, %arg2: i32, %arg3: i32, %arg4: memref<8x2x32xf32, #tpu.memory_space<vmem>>, %arg5: memref<8x2xi32, #tpu.memory_space<vmem>>, %arg6: memref<1x2xi32, #tpu.memory_space<vmem>>, %arg7: memref<1x1x2xf32, #tpu.memory_space<vmem>>, %arg8: memref<8x2xf32, #tpu.memory_space<vmem>>, %arg9: memref<8x2xf32, #tpu.memory_space<vmem>>, %arg10: memref<8x2xf32, #tpu.memory_space<vmem>>) attributes {dimension_semantics = [#tpu.dimension_semantics<parallel>, #tpu.dimension_semantics<parallel>, #tpu.dimension_semantics<arbitrary>, #tpu.dimension_semantics<arbitrary>], iteration_bounds = array<i64: 1, 1, 1, 1>, scalar_prefetch = 0 : i64, scratch_operands = 3 : i64, tpu.core_type = #tpu.core_type<tc>, window_params = [{transform_indices = @transform_0, window_bounds = array<i64: 8, 2, 32>}, {transform_indices = @transform_1, window_bounds = array<i64: 8, 2>}, {transform_indices = @transform_2, window_bounds = array<i64: 1, 2>}, {transform_indices = @transform_3, window_bounds = array<i64: 1, 1, 2>}]} {
    %c0_i32 = arith.constant 0 : i32
    %0 = arith.cmpi eq, %arg2, %c0_i32 : i32
    %c0_i32_0 = arith.constant 0 : i32
    %1 = arith.cmpi eq, %arg3, %c0_i32_0 : i32
    %2 = arith.andi %0, %1 : i1
    %3 = arith.extui %2 : i1 to i32
    %c0_i32_1 = arith.constant 0 : i32
    %4 = arith.cmpi ne, %3, %c0_i32_1 : i32
    scf.if %4 {
      %cst_25 = arith.constant 0.000000e+00 : f32
      %42 = vector.broadcast %cst_25 : f32 to vector<1x1x2xf32>
      %c0_26 = arith.constant 0 : index
      %c0_27 = arith.constant 0 : index
      %c0_28 = arith.constant 0 : index
      %43 = vector.load %arg7[%c0_26, %c0_27, %c0_28] : memref<1x1x2xf32, #tpu.memory_space<vmem>>, vector<1x1x2xf32>
      tpu.vector_store %arg7[%c0_26, %c0_27, %c0_28], %42 {strides = array<i32>} : memref<1x1x2xf32, #tpu.memory_space<vmem>>, vector<1x1x2xf32>,
    } else {
    }
    %c0_i32_2 = arith.constant 0 : i32
    %5 = arith.cmpi eq, %arg3, %c0_i32_2 : i32
    %6 = arith.extui %5 : i1 to i32
    %c0_i32_3 = arith.constant 0 : i32
    %7 = arith.cmpi ne, %6, %c0_i32_3 : i32
    scf.if %7 {
      %cst_25 = arith.constant 0xFF800000 : f32
      %42 = vector.broadcast %cst_25 : f32 to vector<8x2xf32>
      %c0_26 = arith.constant 0 : index
      %c0_27 = arith.constant 0 : index
      %43 = vector.load %arg8[%c0_26, %c0_27] : memref<8x2xf32, #tpu.memory_space<vmem>>, vector<8x2xf32>
      tpu.vector_store %arg8[%c0_26, %c0_27], %42 {strides = array<i32>} : memref<8x2xf32, #tpu.memory_space<vmem>>, vector<8x2xf32>,
      %cst_28 = arith.constant 0.000000e+00 : f32
      %44 = vector.broadcast %cst_28 : f32 to vector<8x2xf32>
      %c0_29 = arith.constant 0 : index
      %c0_30 = arith.constant 0 : index
      %45 = vector.load %arg9[%c0_29, %c0_30] : memref<8x2xf32, #tpu.memory_space<vmem>>, vector<8x2xf32>
      tpu.vector_store %arg9[%c0_29, %c0_30], %44 {strides = array<i32>} : memref<8x2xf32, #tpu.memory_space<vmem>>, vector<8x2xf32>,
      %cst_31 = arith.constant 0.000000e+00 : f32
      %46 = vector.broadcast %cst_31 : f32 to vector<8x2xf32>
      %c0_32 = arith.constant 0 : index
      %c0_33 = arith.constant 0 : index
      %47 = vector.load %arg10[%c0_32, %c0_33] : memref<8x2xf32, #tpu.memory_space<vmem>>, vector<8x2xf32>
      tpu.vector_store %arg10[%c0_32, %c0_33], %46 {strides = array<i32>} : memref<8x2xf32, #tpu.memory_space<vmem>>, vector<8x2xf32>,
    } else {
    }
    %c0 = arith.constant 0 : index
    %c0_4 = arith.constant 0 : index
    %c0_5 = arith.constant 0 : index
    %8 = vector.load %arg4[%c0, %c0_4, %c0_5] : memref<8x2x32xf32, #tpu.memory_space<vmem>>, vector<8x2x32xf32>
    %c0_6 = arith.constant 0 : index
    %c0_7 = arith.constant 0 : index
    %9 = vector.load %arg5[%c0_6, %c0_7] : memref<8x2xi32, #tpu.memory_space<vmem>>, vector<8x2xi32>
    %cst = arith.constant dense<0xFF800000> : vector<8x2xf32>
    %10 = vector.multi_reduction <maximumf>, %8, %cst [2] : vector<8x2x32xf32> to vector<8x2xf32>
    %c0_8 = arith.constant 0 : index
    %c0_9 = arith.constant 0 : index
    %11 = vector.load %arg8[%c0_8, %c0_9] : memref<8x2xf32, #tpu.memory_space<vmem>>, vector<8x2xf32>
    %12 = arith.maximumf %11, %10 : vector<8x2xf32>
    %13 = vector.shape_cast %12 : vector<8x2xf32> to vector<8x2x1xf32>
    %14 = vector.broadcast %13 : vector<8x2x1xf32> to vector<8x2x32xf32>
    %15 = arith.subf %8, %14 : vector<8x2x32xf32>
    %16 = math.exp %15 : vector<8x2x32xf32>
    %cst_10 = arith.constant dense<0.000000e+00> : vector<8x2xf32>
    %17 = vector.multi_reduction <add>, %16, %cst_10 [2] : vector<8x2x32xf32> to vector<8x2xf32>
    %c0_11 = arith.constant 0 : index
    %c0_12 = arith.constant 0 : index
    %18 = vector.load %arg9[%c0_11, %c0_12] : memref<8x2xf32, #tpu.memory_space<vmem>>, vector<8x2xf32>
    %19 = arith.subf %11, %12 : vector<8x2xf32>
    %20 = math.exp %19 : vector<8x2xf32>
    %21 = arith.mulf %18, %20 : vector<8x2xf32>
    %22 = arith.addf %21, %17 : vector<8x2xf32>
    %c0_13 = arith.constant 0 : index
    %c0_14 = arith.constant 0 : index
    %23 = vector.load %arg9[%c0_13, %c0_14] : memref<8x2xf32, #tpu.memory_space<vmem>>, vector<8x2xf32>
    tpu.vector_store %arg9[%c0_13, %c0_14], %22 {strides = array<i32>} : memref<8x2xf32, #tpu.memory_space<vmem>>, vector<8x2xf32>,
    %c0_15 = arith.constant 0 : index
    %c0_16 = arith.constant 0 : index
    %24 = vector.load %arg8[%c0_15, %c0_16] : memref<8x2xf32, #tpu.memory_space<vmem>>, vector<8x2xf32>
    tpu.vector_store %arg8[%c0_15, %c0_16], %12 {strides = array<i32>} : memref<8x2xf32, #tpu.memory_space<vmem>>, vector<8x2xf32>,
    %25 = tpu.iota {dimensions = array<i32: 2>} : vector<1x1x32xi32>
    %c32_i32 = arith.constant 32 : i32
    %26 = arith.muli %arg3, %c32_i32 : i32
    %27 = vector.broadcast %26 : i32 to vector<1x1x32xi32>
    %28 = arith.addi %25, %27 : vector<1x1x32xi32>
    %29 = vector.shape_cast %9 : vector<8x2xi32> to vector<8x2x1xi32>
    %30 = vector.broadcast %28 : vector<1x1x32xi32> to vector<8x2x32xi32>
    %31 = vector.broadcast %29 : vector<8x2x1xi32> to vector<8x2x32xi32>
    %32 = arith.cmpi eq, %30, %31 : vector<8x2x32xi32>
    %c0_17 = arith.constant 0 : index
    %c0_18 = arith.constant 0 : index
    %33 = vector.load %arg10[%c0_17, %c0_18] : memref<8x2xf32, #tpu.memory_space<vmem>>, vector<8x2xf32>
    %cst_19 = arith.constant 0.000000e+00 : f32
    %34 = vector.broadcast %cst_19 : f32 to vector<8x2x32xf32>
    %35 = arith.select %32, %8, %34 : vector<8x2x32xi1>, vector<8x2x32xf32>
    %cst_20 = arith.constant dense<0.000000e+00> : vector<8x2xf32>
    %36 = vector.multi_reduction <add>, %35, %cst_20 [2] : vector<8x2x32xf32> to vector<8x2xf32>
    %37 = arith.addf %33, %36 : vector<8x2xf32>
    %c0_21 = arith.constant 0 : index
    %c0_22 = arith.constant 0 : index
    %38 = vector.load %arg10[%c0_21, %c0_22] : memref<8x2xf32, #tpu.memory_space<vmem>>, vector<8x2xf32>
    tpu.vector_store %arg10[%c0_21, %c0_22], %37 {strides = array<i32>} : memref<8x2xf32, #tpu.memory_space<vmem>>, vector<8x2xf32>,
    %c0_i32_23 = arith.constant 0 : i32
    %39 = arith.cmpi eq, %arg3, %c0_i32_23 : i32
    %40 = arith.extui %39 : i1 to i32
    %c0_i32_24 = arith.constant 0 : i32
    %41 = arith.cmpi ne, %40, %c0_i32_24 : i32
    scf.if %41 {
      %c0_25 = arith.constant 0 : index
      %c0_26 = arith.constant 0 : index
      %42 = vector.load %arg6[%c0_25, %c0_26] : memref<1x2xi32, #tpu.memory_space<vmem>>, vector<1x2xi32>
      %c0_27 = arith.constant 0 : index
      %c0_28 = arith.constant 0 : index
      %43 = vector.load %arg8[%c0_27, %c0_28] : memref<8x2xf32, #tpu.memory_space<vmem>>, vector<8x2xf32>
      %c0_29 = arith.constant 0 : index
      %c0_30 = arith.constant 0 : index
      %44 = vector.load %arg9[%c0_29, %c0_30] : memref<8x2xf32, #tpu.memory_space<vmem>>, vector<8x2xf32>
      %45 = math.log %44 : vector<8x2xf32>
      %46 = arith.addf %43, %45 : vector<8x2xf32>
      %c0_31 = arith.constant 0 : index
      %c0_32 = arith.constant 0 : index
      %47 = vector.load %arg10[%c0_31, %c0_32] : memref<8x2xf32, #tpu.memory_space<vmem>>, vector<8x2xf32>
      %48 = arith.subf %46, %47 : vector<8x2xf32>
      %c1_i32 = arith.constant 1 : i32
      %49 = arith.muli %arg0, %c1_i32 : i32
      %50 = arith.addi %49, %arg2 : i32
      %51 = tpu.iota {dimensions = array<i32: 0>} : vector<8x2xi32>
      %c8_i32 = arith.constant 8 : i32
      %52 = arith.muli %50, %c8_i32 : i32
      %53 = vector.broadcast %52 : i32 to vector<8x2xi32>
      %54 = arith.addi %51, %53 : vector<8x2xi32>
      %55 = vector.broadcast %42 : vector<1x2xi32> to vector<8x2xi32>
      %56 = arith.cmpi slt, %54, %55 : vector<8x2xi32>
      %cst_33 = arith.constant 0.000000e+00 : f32
      %57 = vector.broadcast %cst_33 : f32 to vector<8x2xf32>
      %58 = arith.select %56, %48, %57 : vector<8x2xi1>, vector<8x2xf32>
      %c0_34 = arith.constant 0 : index
      %c0_35 = arith.constant 0 : index
      %c0_36 = arith.constant 0 : index
      %59 = vector.load %arg7[%c0_34, %c0_35, %c0_36] : memref<1x1x2xf32, #tpu.memory_space<vmem>>, vector<1x1x2xf32>
      %cst_37 = arith.constant dense<0.000000e+00> : vector<2xf32>
      %60 = vector.multi_reduction <add>, %58, %cst_37 [0] : vector<8x2xf32> to vector<2xf32>
      %61 = vector.shape_cast %60 : vector<2xf32> to vector<1x1x2xf32>
      %62 = arith.addf %59, %61 : vector<1x1x2xf32>
      %c0_38 = arith.constant 0 : index
      %c0_39 = arith.constant 0 : index
      %c0_40 = arith.constant 0 : index
      %63 = vector.load %arg7[%c0_38, %c0_39, %c0_40] : memref<1x1x2xf32, #tpu.memory_space<vmem>>, vector<1x1x2xf32>
      tpu.vector_store %arg7[%c0_38, %c0_39, %c0_40], %62 {strides = array<i32>} : memref<1x1x2xf32, #tpu.memory_space<vmem>>, vector<1x1x2xf32>,
    } else {
    }
    return
  }
  func.func @transform_0(%arg0: i32, %arg1: i32, %arg2: i32, %arg3: i32) -> (i32, i32, i32) {
    %c1_i32 = arith.constant 1 : i32
    %0 = arith.muli %arg0, %c1_i32 : i32
    %1 = arith.addi %0, %arg2 : i32
    %c0_i32 = arith.constant 0 : i32
    return %1, %arg1, %arg3 : i32, i32, i32
  }
  func.func @transform_1(%arg0: i32, %arg1: i32, %arg2: i32, %arg3: i32) -> (i32, i32) {
    %c1_i32 = arith.constant 1 : i32
    %0 = arith.muli %arg0, %c1_i32 : i32
    %1 = arith.addi %0, %arg2 : i32
    %c0_i32 = arith.constant 0 : i32
    return %1, %arg1 : i32, i32
  }
  func.func @transform_2(%arg0: i32, %arg1: i32, %arg2: i32, %arg3: i32) -> (i32, i32) {
    %c0_i32 = arith.constant 0 : i32
    %c0_i32_0 = arith.constant 0 : i32
    return %c0_i32, %arg1 : i32, i32
  }
  func.func @transform_3(%arg0: i32, %arg1: i32, %arg2: i32, %arg3: i32) -> (i32, i32, i32) {
    %c0_i32 = arith.constant 0 : i32
    %c0_i32_0 = arith.constant 0 : i32
    return %arg0, %c0_i32, %arg1 : i32, i32, i32
  }
}

</mosaic_0001>

<llo_original>
// kernel: tpu_custom_call.1
$region0: #{tpu_custom_call.1}
  #allocation0 [shape = 'u32[]', space=smem, size = 0x4, offset = 0x4, fixed_abs, tag = 'smem constant byte address 0x4 - core index']
  #allocation1 [shape = 'u32[144,128]{1,0:T(1,128)}', space=vmem, size = 0x12000, scoped, tag = 'internal scratch']
  #allocation2 [shape = 'f32[8,2]{1,0:T(8,128)}', space=vmem, size = 0x1000, scoped, tag = 'scratch operand']
  #allocation3 [shape = 'f32[8,2]{1,0:T(8,128)}', space=vmem, size = 0x1000, scoped, tag = 'scratch operand']
  #allocation4 [shape = 'f32[8,2]{1,0:T(8,128)}', space=vmem, size = 0x1000, scoped, tag = 'scratch operand']
  %s0 = inlined_call_operand.hbm [shape: f32[8,2,32], index: 0, kind: input, shape index: {}]
  %s1 = inlined_call_operand.vmem [shape: s32[8,2], index: 1, kind: input, shape index: {}]
  %s2 = inlined_call_operand.vmem [shape: s32[1,2], index: 2, kind: input, shape index: {}]
  %s3 = inlined_call_operand.hbm [shape: f32[1,1,2], index: 3, kind: output, shape index: {}]
  %s4 = sld [smem:[#allocation0]]
  $region38: #{tpu_custom_call.1} parent=0
    _
  %s6 = ssub.s32 1, %s4
  %s7 = scalar_select 0, %s6, %s4
  $region1: #{tpu_custom_call.1} parent=0
    #allocation5 [shape = 'u8[8192]{0}', space=vmem, size = 0x2000, scoped, tag = 'input window, operand 0, single buffered']
    #allocation6 [shape = 's32[1]{0}', space=sflag, size = 0x4, scoped, tag = 'scoped memory for tpu_custom_call.1']
    #allocation7 [shape = 's32[1]{0}', space=sflag, size = 0x4, scoped, tag = 'scoped memory for tpu_custom_call.1']
    #allocation8 [shape = 'u8[512]{0}', space=vmem, size = 0x400, scoped, tag = 'output window, operand 0, single buffered']
    %8 = vsyncpa [#allocation6], 0
    %9 = vsyncpa [#allocation7], 0
    // Predicated region
    $region2: #{tpu_custom_call.1} parent=1 // pred_check
      _
    $region3: #{tpu_custom_call.1} parent=1 // pred_check_branch
      %11 = sbr.rel (0) target = $region5
    $region4: #{tpu_custom_call.1} parent=1 // pred_region
      %s12 = sadd.s32 0, 0
      %s13 = smul.u32 8, %s12
      %s15 = ssub.s32 256, 256
      %16 = vsyncadd [#allocation6], %s15
      %s17 = smul.addr %s13, 32
      %s18 = scalar_lea.hbm %s0, %s17
      %s19 = sshll.u32 [#allocation5], 4
      %s20 = int_to_ptr.vmem [resolvable:$true] %s19
      %25 = dma.hbm_to_vmem [thread:$0]  %s18, 256, %s20, [#allocation6], 32, 32, 2
    $region5: #{tpu_custom_call.1} parent=1 // pred_fallthru
      _
    // Predicated region
    $region6: #{tpu_custom_call.1} parent=1 // pred_check
      _
    $region7: #{tpu_custom_call.1} parent=1 // pred_check_branch
      %27 = sbr.rel (0) target = $region9
    $region8: #{tpu_custom_call.1} parent=1 // pred_region
      %s28 = sadd.s32 0, 0
      %p29 = scmp.lt.s32.totalorder %s28, 0
      %s30 = scalar_select %p29, %s28, 0
      %s31 = smul.addr %s30, 8
      %s32 = scalar_lea.vmem %s1, %s31
      %s33 = sadd.s32 0, 0
    $region9: #{tpu_custom_call.1} parent=1 // pred_fallthru
      _
    // Predicated region
    $region10: #{tpu_custom_call.1} parent=1 // pred_check
      _
    $region11: #{tpu_custom_call.1} parent=1 // pred_check_branch
      %35 = sbr.rel (0) target = $region13
    $region12: #{tpu_custom_call.1} parent=1 // pred_region
      _
    $region13: #{tpu_custom_call.1} parent=1 // pred_fallthru
      _
    // Predicated region
    $region14: #{tpu_custom_call.1} parent=1 // pred_check
      _
    $region15: #{tpu_custom_call.1} parent=1 // pred_check_branch
      %37 = sbr.rel (0) target = $region17
    $region16: #{tpu_custom_call.1} parent=1 // pred_region
      %38 = dma.done [#allocation6], 256
    $region17: #{tpu_custom_call.1} parent=1 // pred_fallthru
      _
    %s39 = sadd.s32 0, 0
    %p40 = scmp.lt.s32.totalorder %s39, 0
    %s41 = scalar_select %p40, %s39, 0
    %s42 = smul.addr %s41, 8
    %s43 = scalar_lea.vmem %s1, %s42
    %s44 = sadd.s32 0, 0
    %s45 = smul.u32 8, %s44
    %s46 = sadd.s32 0, 0
    %p47 = scmp.lt.s32.totalorder %s46, 0
    %s48 = scalar_select %p47, %s46, 0
    %s49 = smul.addr %s48, 8
    %s50 = scalar_lea.vmem %s1, %s49
    %s51 = sadd.s32 0, 0
    %p52 = scmp.eq.s32.totalorder 0, 0
    %p53 = scmp.eq.s32.totalorder 0, 0
    %p54 = pnand %p52, %p53
    %p55 = pneg %p54
    // Predicated region
    $region18: #{tpu_custom_call.1} parent=1 // pred_check
      _
    $region19: #{tpu_custom_call.1} parent=1 // pred_check_branch
      %57 = sbr.rel (%p54) target = $region21
    $region20: #{tpu_custom_call.1} parent=1 // pred_region
      %vm58 = vcmask 8192
      %59 = vst.msk [vmem:[#allocation8] sm:$0x1] %vm58, 0.0
    $region21: #{tpu_custom_call.1} parent=1 // pred_fallthru
      _
    // Predicated region
    $region22: #{tpu_custom_call.1} parent=1 // pred_check
      %p60 = pneg %p53
    $region23: #{tpu_custom_call.1} parent=1 // pred_check_branch
      %62 = sbr.rel (%p60) target = $region25
    $region24: #{tpu_custom_call.1} parent=1 // pred_region
      %vm63 = vcmask 15360
      %64 = vst.msk [vmem:[#allocation2] sm:$0xff] %vm63, -inf
      %65 = vst.msk [vmem:[#allocation3] sm:$0xff] %vm63, 0.0
      %66 = vst.msk [vmem:[#allocation4] sm:$0xff] %vm63, 0.0
    $region25: #{tpu_custom_call.1} parent=1 // pred_fallthru
      _
    %v67 = vld [vmem:[#allocation5] sm:$0x3]
    %v68 = vld [vmem:[#allocation5 + $0x2] sm:$0x3]
    %v69 = vld [vmem:[#allocation5 + $0x4] sm:$0x3]
    %v70 = vld [vmem:[#allocation5 + $0x6] sm:$0x3]
    %v71 = vld [vmem:[#allocation5 + $0x8] sm:$0x3]
    %v72 = vld [vmem:[#allocation5 + $0xa] sm:$0x3]
    %v73 = vld [vmem:[#allocation5 + $0xc] sm:$0x3]
    %v74 = vld [vmem:[#allocation5 + $0xe] sm:$0x3]
    %v75 = vld [vmem:[%s50] sm:$0xff]
    %vm76 = vcmask 254976
    %v77 = vsel %vm76, %v67, -inf
    %78 = vmax.xlane.f32.xlu0 %v77
    %v79 = vpop.xlane.xlu0 %78
    %v80 = vsel %vm76, %v68, -inf
    %81 = vmax.xlane.f32.xlu0 %v80
    %v82 = vpop.xlane.xlu0 %81
    %v83 = vsel %vm76, %v69, -inf
    %84 = vmax.xlane.f32.xlu0 %v83
    %v85 = vpop.xlane.xlu0 %84
    %v86 = vsel %vm76, %v70, -inf
    %87 = vmax.xlane.f32.xlu0 %v86
    %v88 = vpop.xlane.xlu0 %87
    %v89 = vsel %vm76, %v71, -inf
    %90 = vmax.xlane.f32.xlu0 %v89
    %v91 = vpop.xlane.xlu0 %90
    %v92 = vsel %vm76, %v72, -inf
    %93 = vmax.xlane.f32.xlu0 %v92
    %v94 = vpop.xlane.xlu0 %93
    %v95 = vsel %vm76, %v73, -inf
    %96 = vmax.xlane.f32.xlu0 %v95
    %v97 = vpop.xlane.xlu0 %96
    %v98 = vsel %vm76, %v74, -inf
    %99 = vmax.xlane.f32.xlu0 %v98
    %v100 = vpop.xlane.xlu0 %99
    %v101 = vld [vmem:[#allocation2] sm:$0xff]
    %v110 = vlaneseq
    %v111 = vand.u32 %v110, 127
    %v112 = vlaneseq
    %v113 = vshrl.u32 %v112, 7
    %v114 = vsub.s32 %v111, %v113
    %v115 = vrot.slane %v79, %v114
    %v116 = vlaneseq
    %v117 = vshrl.u32 %v116, 7
    %v118 = vsub.s32 %v111, %v117
    %v119 = vrot.slane %v82, %v118
    %v120 = vlaneseq
    %v121 = vshrl.u32 %v120, 7
    %v122 = vsub.s32 %v111, %v121
    %v123 = vrot.slane %v85, %v122
    %v124 = vlaneseq
    %v125 = vshrl.u32 %v124, 7
    %v126 = vsub.s32 %v111, %v125
    %v127 = vrot.slane %v88, %v126
    %v128 = vlaneseq
    %v129 = vshrl.u32 %v128, 7
    %v130 = vsub.s32 %v111, %v129
    %v131 = vrot.slane %v91, %v130
    %v132 = vlaneseq
    %v133 = vshrl.u32 %v132, 7
    %v134 = vsub.s32 %v111, %v133
    %v135 = vrot.slane %v94, %v134
    %v136 = vlaneseq
    %v137 = vshrl.u32 %v136, 7
    %v138 = vsub.s32 %v111, %v137
    %v139 = vrot.slane %v97, %v138
    %v140 = vlaneseq
    %v141 = vshrl.u32 %v140, 7
    %v142 = vsub.s32 %v111, %v141
    %v143 = vrot.slane %v100, %v142
    %vm144 = vcmask 1041409
    %v145 = vsel %vm144, %v119, %v115
    %vm146 = vcmask 1042434
    %v147 = vsel %vm146, %v123, %v145
    %vm148 = vcmask 1043459
    %v149 = vsel %vm148, %v127, %v147
    %vm150 = vcmask 1044484
    %v151 = vsel %vm150, %v131, %v149
    %vm152 = vcmask 1045509
    %v153 = vsel %vm152, %v135, %v151
    %vm154 = vcmask 1046534
    %v155 = vsel %vm154, %v139, %v153
    %vm156 = vcmask 1047559
    %v157 = vsel %vm156, %v143, %v155
    %v159 = vmax.f32 %v101, %v157
    %v160 = vlaneseq
    %v161 = vshrl.u32 %v160, 7
    %v162 = vsub.s32 0, %v161
    %v163 = vrot.slane %v159, %v162
    %165 = vbcast.lane.b32.xlu0 %v163, 256
    %v166 = vpop.permute.xlu0 %165
    %v167 = vlaneseq
    %v168 = vshrl.u32 %v167, 7
    %v169 = vsub.s32 1, %v168
    %v170 = vrot.slane %v159, %v169
    %172 = vbcast.lane.b32.xlu0 %v170, 256
    %v173 = vpop.permute.xlu0 %172
    %v174 = vlaneseq
    %v175 = vshrl.u32 %v174, 7
    %v176 = vsub.s32 2, %v175
    %v177 = vrot.slane %v159, %v176
    %179 = vbcast.lane.b32.xlu0 %v177, 256
    %v180 = vpop.permute.xlu0 %179
    %v181 = vlaneseq
    %v182 = vshrl.u32 %v181, 7
    %v183 = vsub.s32 3, %v182
    %v184 = vrot.slane %v159, %v183
    %186 = vbcast.lane.b32.xlu0 %v184, 256
    %v187 = vpop.permute.xlu0 %186
    %v188 = vlaneseq
    %v189 = vshrl.u32 %v188, 7
    %v190 = vsub.s32 4, %v189
    %v191 = vrot.slane %v159, %v190
    %193 = vbcast.lane.b32.xlu0 %v191, 256
    %v194 = vpop.permute.xlu0 %193
    %v195 = vlaneseq
    %v196 = vshrl.u32 %v195, 7
    %v197 = vsub.s32 5, %v196
    %v198 = vrot.slane %v159, %v197
    %200 = vbcast.lane.b32.xlu0 %v198, 256
    %v201 = vpop.permute.xlu0 %200
    %v202 = vlaneseq
    %v203 = vshrl.u32 %v202, 7
    %v204 = vsub.s32 6, %v203
    %v205 = vrot.slane %v159, %v204
    %207 = vbcast.lane.b32.xlu0 %v205, 256
    %v208 = vpop.permute.xlu0 %207
    %v209 = vlaneseq
    %v210 = vshrl.u32 %v209, 7
    %v211 = vsub.s32 7, %v210
    %v212 = vrot.slane %v159, %v211
    %214 = vbcast.lane.b32.xlu0 %v212, 256
    %v215 = vpop.permute.xlu0 %214
    %v216 = vsub.f32 %v67, %v166
    %v217 = vsub.f32 %v68, %v173
    %v218 = vsub.f32 %v69, %v180
    %v219 = vsub.f32 %v70, %v187
    %v220 = vsub.f32 %v71, %v194
    %v221 = vsub.f32 %v72, %v201
    %v222 = vsub.f32 %v73, %v208
    %v223 = vsub.f32 %v74, %v215
    %v224 = vmul.f32 %v216, 1.442695
    %v225 = vpow.pop %v224
    %v226 = vmul.f32 %v217, 1.442695
    %v227 = vpow.pop %v226
    %v228 = vmul.f32 %v218, 1.442695
    %v229 = vpow.pop %v228
    %v230 = vmul.f32 %v219, 1.442695
    %v231 = vpow.pop %v230
    %v232 = vmul.f32 %v220, 1.442695
    %v233 = vpow.pop %v232
    %v234 = vmul.f32 %v221, 1.442695
    %v235 = vpow.pop %v234
    %v236 = vmul.f32 %v222, 1.442695
    %v237 = vpow.pop %v236
    %v238 = vmul.f32 %v223, 1.442695
    %v239 = vpow.pop %v238
    %v240 = vsel %vm76, %v225, 0.0
    %241 = vadd.xlane.f32.xlu0 %v240
    %v242 = vpop.xlane.xlu0 %241
    %v243 = vsel %vm76, %v227, 0.0
    %244 = vadd.xlane.f32.xlu0 %v243
    %v245 = vpop.xlane.xlu0 %244
    %v246 = vsel %vm76, %v229, 0.0
    %247 = vadd.xlane.f32.xlu0 %v246
    %v248 = vpop.xlane.xlu0 %247
    %v249 = vsel %vm76, %v231, 0.0
    %250 = vadd.xlane.f32.xlu0 %v249
    %v251 = vpop.xlane.xlu0 %250
    %v252 = vsel %vm76, %v233, 0.0
    %253 = vadd.xlane.f32.xlu0 %v252
    %v254 = vpop.xlane.xlu0 %253
    %v255 = vsel %vm76, %v235, 0.0
    %256 = vadd.xlane.f32.xlu0 %v255
    %v257 = vpop.xlane.xlu0 %256
    %v258 = vsel %vm76, %v237, 0.0
    %259 = vadd.xlane.f32.xlu0 %v258
    %v260 = vpop.xlane.xlu0 %259
    %v261 = vsel %vm76, %v239, 0.0
    %262 = vadd.xlane.f32.xlu0 %v261
    %v263 = vpop.xlane.xlu0 %262
    %v264 = vld [vmem:[#allocation3] sm:$0xff]
    %v265 = vsub.f32 %v101, %v159
    %v266 = vmul.f32 %v265, 1.442695
    %v267 = vpow.pop %v266
    %v268 = vmul.f32 %v264, %v267
    %v277 = vlaneseq
    %v278 = vshrl.u32 %v277, 7
    %v279 = vsub.s32 %v111, %v278
    %v280 = vrot.slane %v242, %v279
    %v281 = vlaneseq
    %v282 = vshrl.u32 %v281, 7
    %v283 = vsub.s32 %v111, %v282
    %v284 = vrot.slane %v245, %v283
    %v285 = vlaneseq
    %v286 = vshrl.u32 %v285, 7
    %v287 = vsub.s32 %v111, %v286
    %v288 = vrot.slane %v248, %v287
    %v289 = vlaneseq
    %v290 = vshrl.u32 %v289, 7
    %v291 = vsub.s32 %v111, %v290
    %v292 = vrot.slane %v251, %v291
    %v293 = vlaneseq
    %v294 = vshrl.u32 %v293, 7
    %v295 = vsub.s32 %v111, %v294
    %v296 = vrot.slane %v254, %v295
    %v297 = vlaneseq
    %v298 = vshrl.u32 %v297, 7
    %v299 = vsub.s32 %v111, %v298
    %v300 = vrot.slane %v257, %v299
    %v301 = vlaneseq
    %v302 = vshrl.u32 %v301, 7
    %v303 = vsub.s32 %v111, %v302
    %v304 = vrot.slane %v260, %v303
    %v305 = vlaneseq
    %v306 = vshrl.u32 %v305, 7
    %v307 = vsub.s32 %v111, %v306
    %v308 = vrot.slane %v263, %v307
    %v309 = vsel %vm144, %v284, %v280
    %v310 = vsel %vm146, %v288, %v309
    %v311 = vsel %vm148, %v292, %v310
    %v312 = vsel %vm150, %v296, %v311
    %v313 = vsel %vm152, %v300, %v312
    %v314 = vsel %vm154, %v304, %v313
    %v315 = vsel %vm156, %v308, %v314
    %v317 = vadd.f32 %v268, %v315
    %vm318 = vcmask 15360
    %319 = vst.msk [vmem:[#allocation3] sm:$0xff] %vm318, %v317
    %320 = vst.msk [vmem:[#allocation2] sm:$0xff] %vm318, %v159
    %s321 = smul.u32 0, 32
    %v322 = vstv %s321
    %v323 = vadd.s32 %v111, %v322
    %v324 = vlaneseq
    %v325 = vshrl.u32 %v324, 7
    %v326 = vsub.s32 0, %v325
    %v327 = vrot.slane %v75, %v326
    %329 = vbcast.lane.b32.xlu0 %v327, 256
    %v330 = vpop.permute.xlu0 %329
    %v331 = vlaneseq
    %v332 = vshrl.u32 %v331, 7
    %v333 = vsub.s32 1, %v332
    %v334 = vrot.slane %v75, %v333
    %336 = vbcast.lane.b32.xlu0 %v334, 256
    %v337 = vpop.permute.xlu0 %336
    %v338 = vlaneseq
    %v339 = vshrl.u32 %v338, 7
    %v340 = vsub.s32 2, %v339
    %v341 = vrot.slane %v75, %v340
    %343 = vbcast.lane.b32.xlu0 %v341, 256
    %v344 = vpop.permute.xlu0 %343
    %v345 = vlaneseq
    %v346 = vshrl.u32 %v345, 7
    %v347 = vsub.s32 3, %v346
    %v348 = vrot.slane %v75, %v347
    %350 = vbcast.lane.b32.xlu0 %v348, 256
    %v351 = vpop.permute.xlu0 %350
    %v352 = vlaneseq
    %v353 = vshrl.u32 %v352, 7
    %v354 = vsub.s32 4, %v353
    %v355 = vrot.slane %v75, %v354
    %357 = vbcast.lane.b32.xlu0 %v355, 256
    %v358 = vpop.permute.xlu0 %357
    %v359 = vlaneseq
    %v360 = vshrl.u32 %v359, 7
    %v361 = vsub.s32 5, %v360
    %v362 = vrot.slane %v75, %v361
    %364 = vbcast.lane.b32.xlu0 %v362, 256
    %v365 = vpop.permute.xlu0 %364
    %v366 = vlaneseq
    %v367 = vshrl.u32 %v366, 7
    %v368 = vsub.s32 6, %v367
    %v369 = vrot.slane %v75, %v368
    %371 = vbcast.lane.b32.xlu0 %v369, 256
    %v372 = vpop.permute.xlu0 %371
    %v373 = vlaneseq
    %v374 = vshrl.u32 %v373, 7
    %v375 = vsub.s32 7, %v374
    %v376 = vrot.slane %v75, %v375
    %378 = vbcast.lane.b32.xlu0 %v376, 256
    %v379 = vpop.permute.xlu0 %378
    %vm380 = vcmp.eq.s32.totalorder %v323, %v330
    %vm381 = vcmp.eq.s32.totalorder %v323, %v337
    %vm382 = vcmp.eq.s32.totalorder %v323, %v344
    %vm383 = vcmp.eq.s32.totalorder %v323, %v351
    %vm384 = vcmp.eq.s32.totalorder %v323, %v358
    %vm385 = vcmp.eq.s32.totalorder %v323, %v365
    %vm386 = vcmp.eq.s32.totalorder %v323, %v372
    %vm387 = vcmp.eq.s32.totalorder %v323, %v379
    %v388 = vld [vmem:[#allocation4] sm:$0xff]
    %v389 = vsel %vm380, %v67, 0.0
    %v390 = vsel %vm381, %v68, 0.0
    %v391 = vsel %vm382, %v69, 0.0
    %v392 = vsel %vm383, %v70, 0.0
    %v393 = vsel %vm384, %v71, 0.0
    %v394 = vsel %vm385, %v72, 0.0
    %v395 = vsel %vm386, %v73, 0.0
    %v396 = vsel %vm387, %v74, 0.0
    %v397 = vsel %vm76, %v389, 0.0
    %398 = vadd.xlane.f32.xlu0 %v397
    %v399 = vpop.xlane.xlu0 %398
    %v400 = vsel %vm76, %v390, 0.0
    %401 = vadd.xlane.f32.xlu0 %v400
    %v402 = vpop.xlane.xlu0 %401
    %v403 = vsel %vm76, %v391, 0.0
    %404 = vadd.xlane.f32.xlu0 %v403
    %v405 = vpop.xlane.xlu0 %404
    %v406 = vsel %vm76, %v392, 0.0
    %407 = vadd.xlane.f32.xlu0 %v406
    %v408 = vpop.xlane.xlu0 %407
    %v409 = vsel %vm76, %v393, 0.0
    %410 = vadd.xlane.f32.xlu0 %v409
    %v411 = vpop.xlane.xlu0 %410
    %v412 = vsel %vm76, %v394, 0.0
    %413 = vadd.xlane.f32.xlu0 %v412
    %v414 = vpop.xlane.xlu0 %413
    %v415 = vsel %vm76, %v395, 0.0
    %416 = vadd.xlane.f32.xlu0 %v415
    %v417 = vpop.xlane.xlu0 %416
    %v418 = vsel %vm76, %v396, 0.0
    %419 = vadd.xlane.f32.xlu0 %v418
    %v420 = vpop.xlane.xlu0 %419
    %v429 = vlaneseq
    %v430 = vshrl.u32 %v429, 7
    %v431 = vsub.s32 %v111, %v430
    %v432 = vrot.slane %v399, %v431
    %v433 = vlaneseq
    %v434 = vshrl.u32 %v433, 7
    %v435 = vsub.s32 %v111, %v434
    %v436 = vrot.slane %v402, %v435
    %v437 = vlaneseq
    %v438 = vshrl.u32 %v437, 7
    %v439 = vsub.s32 %v111, %v438
    %v440 = vrot.slane %v405, %v439
    %v441 = vlaneseq
    %v442 = vshrl.u32 %v441, 7
    %v443 = vsub.s32 %v111, %v442
    %v444 = vrot.slane %v408, %v443
    %v445 = vlaneseq
    %v446 = vshrl.u32 %v445, 7
    %v447 = vsub.s32 %v111, %v446
    %v448 = vrot.slane %v411, %v447
    %v449 = vlaneseq
    %v450 = vshrl.u32 %v449, 7
    %v451 = vsub.s32 %v111, %v450
    %v452 = vrot.slane %v414, %v451
    %v453 = vlaneseq
    %v454 = vshrl.u32 %v453, 7
    %v455 = vsub.s32 %v111, %v454
    %v456 = vrot.slane %v417, %v455
    %v457 = vlaneseq
    %v458 = vshrl.u32 %v457, 7
    %v459 = vsub.s32 %v111, %v458
    %v460 = vrot.slane %v420, %v459
    %v461 = vsel %vm144, %v436, %v432
    %v462 = vsel %vm146, %v440, %v461
    %v463 = vsel %vm148, %v444, %v462
    %v464 = vsel %vm150, %v448, %v463
    %v465 = vsel %vm152, %v452, %v464
    %v466 = vsel %vm154, %v456, %v465
    %v467 = vsel %vm156, %v460, %v466
    %v469 = vadd.f32 %v388, %v467
    %470 = vst.msk [vmem:[#allocation4] sm:$0xff] %vm318, %v469
    // Predicated region
    $region26: #{tpu_custom_call.1} parent=1 // pred_check
      %p471 = pneg %p53
    $region27: #{tpu_custom_call.1} parent=1 // pred_check_branch
      %473 = sbr.rel (%p471) target = $region29
    $region28: #{tpu_custom_call.1} parent=1 // pred_region
      %v474 = vld [vmem:[%s2] sm:$0x1]
      %v475 = vld [vmem:[#allocation2] sm:$0xff]
      %v476 = vld [vmem:[#allocation3] sm:$0xff]
      %v477 = vlog2.pop %v476
      %v478 = vmul.f32 %v477, 0.6931472
      %v479 = vadd.f32 %v475, %v478
      %v480 = vld [vmem:[#allocation4] sm:$0xff]
      %v481 = vsub.f32 %v479, %v480
      %s482 = sadd.s32 0, 0
      %v483 = vlaneseq
      %v484 = vshrl.u32 %v483, 7
      %s485 = smul.u32 %s482, 8
      %v486 = vstv %s485
      %v487 = vadd.s32 %v484, %v486
      %v488 = vlaneseq
      %v489 = vshrl.u32 %v488, 7
      %v490 = vsub.s32 0, %v489
      %v491 = vrot.slane %v474, %v490
      %vm492 = vcmp.lt.s32.totalorder %v487, %v491
      %v493 = vsel %vm492, %v481, 0.0
      %v494 = vld [vmem:[#allocation8] sm:$0x1]
      %v495 = vsel %vm318, %v493, 0.0
      %v496 = vrot.slane %v495, 4
      %v497 = vadd.f32 %v495, %v496
      %v498 = vrot.slane %v497, 2
      %v499 = vadd.f32 %v497, %v498
      %v500 = vrot.slane %v499, 1
      %v501 = vadd.f32 %v499, %v500
      %v502 = vadd.f32 %v494, %v501
      %vm503 = vcmask 8192
      %504 = vst.msk [vmem:[#allocation8] sm:$0x1] %vm503, %v502
    $region29: #{tpu_custom_call.1} parent=1 // pred_fallthru
      _
    // Predicated region
    $region30: #{tpu_custom_call.1} parent=1 // pred_check
      _
    $region31: #{tpu_custom_call.1} parent=1 // pred_check_branch
      %506 = sbr.rel (0) target = $region33
    $region32: #{tpu_custom_call.1} parent=1 // pred_region
      %s508 = ssub.s32 16, 16
      %509 = vsyncadd [#allocation7], %s508
      %s511 = sshll.u32 [#allocation8], 4
      %s512 = int_to_ptr.vmem [resolvable:$true] %s511
      %514 = dma.vmem_to_hbm [thread:$0]  %s512, 16, %s3, [#allocation7]
    $region33: #{tpu_custom_call.1} parent=1 // pred_fallthru
      _
    // Predicated region
    $region34: #{tpu_custom_call.1} parent=1 // pred_check
      _
    $region35: #{tpu_custom_call.1} parent=1 // pred_check_branch
      %516 = sbr.rel (0) target = $region37
    $region36: #{tpu_custom_call.1} parent=1 // pred_region
      %517 = dma.done [#allocation7], 16
    $region37: #{tpu_custom_call.1} parent=1 // pred_fallthru
      _
    %518 = vsyncpa [#allocation6], 1
    %519 = vsyncpa [#allocation7], 1

</llo_original>
